<compile_context>
chip_gen: v7x
topology: tpu7x:2x2x1
jax: 0.10.0
libtpu: 0.0.40
codegen_flags: <defaults>
</compile_context>

<pallas_src>
import jax
import jax.numpy as jnp
from jax.experimental import pallas as pl
from jax.experimental.pallas import tpu as pltpu

NUM_LAYER2_REPEATS = 7     # layer2 (shared weights) is applied 7 times in forward()
LEAKY_SLOPE = 0.01         # F.leaky_relu default negative_slope


def _deepcust_kernel(a_ref, x_ref, w1_ref, b1_ref, w2_ref, b2_ref,
                     w5_ref, b5_ref, o_ref):
    n = a_ref.shape[0]
    hidden = w2_ref.shape[1]
    bf16 = jnp.bfloat16
    f32 = jnp.float32

    a = a_ref[...]                                   # (N, N) bf16, loaded once

    def lrelu(h):
        # max(h, slope*h) == leaky_relu for slope < 1; f32 on the VPU.
        return jnp.maximum(h, LEAKY_SLOPE * h)

    # ---- layer1: (A @ X) @ W1 + b1 (4 -> 64) -------------------------------
    # Aggregate in the 4-wide feature space before projecting to 64 so the
    # N^2-sized matmul only has 4 output lanes.
    ax = jnp.dot(a, x_ref[...], preferred_element_type=f32)              # (N, 4)
    h1 = jnp.dot(ax.astype(bf16), w1_ref[...], preferred_element_type=f32)
    x = lrelu(h1 + b1_ref[...])                                          # f32 (N, 64)

    # ---- layer2 (64 -> 64), shared weights, applied 7 times (static unroll) -
    w2 = w2_ref[...]                                                     # bf16 (64, 64)
    # Hoisted broadcast: one (N, 64) bias, not one broadcast per unrolled layer.
    b2 = jnp.broadcast_to(b2_ref[...], (n, hidden))                      # f32 (N, 64)
    for _ in range(NUM_LAYER2_REPEATS):
        xw = jnp.dot(x.astype(bf16), w2, preferred_element_type=f32)     # (N, 64)
        h = jnp.dot(a, xw.astype(bf16), preferred_element_type=f32)      # (N, 64)
        x = lrelu(h + b2)

    # ---- layer5: A @ (X @ W5) + b5 (64 -> 3), no activation ----------------
    # dout=3 < din=64, so X@W first keeps the N^2 matmul at 3 output lanes.
    xw5 = jnp.dot(x.astype(bf16), w5_ref[...], preferred_element_type=f32)   # (N, 3)
    h5 = jnp.dot(a, xw5.astype(bf16), preferred_element_type=f32)            # (N, 3)
    o_ref[...] = (h5 + b5_ref[...]).astype(o_ref.dtype)


def deepcust_forward(a_hat, features, params):
    """Fused forward pass of deepcustNet as a single pallas_call."""
    w1, b1 = params["layer1"]
    w2, b2 = params["layer2"]
    w5, b5 = params["layer5"]
    n = features.shape[0]
    out_dim = w5.shape[1]
    bf16 = jnp.bfloat16

    # bf16 matmul operands (MXU-native on all generations, halves resident A_hat);
    # biases stay f32 — bias-add and LeakyReLU run in f32 on the VPU.
    args = (
        a_hat.astype(bf16),
        features.astype(bf16),
        w1.astype(bf16), b1.reshape(1, -1).astype(jnp.float32),
        w2.astype(bf16), b2.reshape(1, -1).astype(jnp.float32),
        w5.astype(bf16), b5.reshape(1, -1).astype(jnp.float32),
    )

    # Advisory cost hint so XLA schedules the fused custom call sensibly.
    def conv_flops(din, dout, agg_width):
        return 2 * n * din * dout + 2 * n * n * agg_width
    flops = (conv_flops(w1.shape[0], w1.shape[1], w1.shape[0])             # layer1: aggregate first
             + NUM_LAYER2_REPEATS * conv_flops(w2.shape[0], w2.shape[1], w2.shape[1])
             + conv_flops(w5.shape[0], w5.shape[1], w5.shape[1]))          # layer5: aggregate last
    bytes_accessed = (sum(int(x.size) * x.dtype.itemsize for x in args)
                      + n * out_dim * 4)

    # VMEM budget: everything resident (A_hat + weights + biases + a few live
    # (N, 64) f32 activation temporaries), with 2x headroom; capped below
    # physical VMEM. Without this the default scoped limit (16/32 MiB) caps
    # the resident-A design far below the hardware as N grows.
    resident_bytes = bytes_accessed + 6 * n * w2.shape[1] * 4
    vmem_limit = int(min(max(2 * resident_bytes, 4 << 20), 100 << 20))

    # Everything fits trivially in VMEM: full-array blocks, no grid.
    # The only sub-128-lane (masked) store is the single final (N, 3) write.
    return pl.pallas_call(
        _deepcust_kernel,
        out_shape=jax.ShapeDtypeStruct((n, out_dim), jnp.float32),
        in_specs=[pl.BlockSpec(memory_space=pltpu.MemorySpace.VMEM)] * len(args),
        out_specs=pl.BlockSpec(memory_space=pltpu.MemorySpace.VMEM),
        compiler_params=pltpu.CompilerParams(vmem_limit_bytes=vmem_limit),
        cost_estimate=pl.CostEstimate(flops=flops, transcendentals=0,
                                      bytes_accessed=bytes_accessed),
    )(*args)


def deepcust_reference(a_hat, features, params):
    """Pure-JAX reference mirroring the kernel math (same bf16 operand casts)."""
    bf16, f32 = jnp.bfloat16, jnp.float32
    w1, b1 = params["layer1"]
    w2, b2 = params["layer2"]
    w5, b5 = params["layer5"]
    a = a_hat.astype(bf16)

    def lrelu(h):
        return jnp.maximum(h, LEAKY_SLOPE * h)

    ax = jnp.dot(a, features.astype(bf16), preferred_element_type=f32)
    x = lrelu(jnp.dot(ax.astype(bf16), w1.astype(bf16),
                      preferred_element_type=f32) + b1)
    for _ in range(NUM_LAYER2_REPEATS):
        xw = jnp.dot(x.astype(bf16), w2.astype(bf16), preferred_element_type=f32)
        x = lrelu(jnp.dot(a, xw.astype(bf16), preferred_element_type=f32) + b2)
    xw5 = jnp.dot(x.astype(bf16), w5.astype(bf16), preferred_element_type=f32)
    return jnp.dot(a, xw5.astype(bf16), preferred_element_type=f32) + b5


def init_params(key):
    """Deterministic nn.Linear-style init (uniform +/- 1/sqrt(fan_in))."""
    dims = {"layer1": (4, 64), "layer2": (64, 64), "layer5": (64, 3)}
    params = {}
    for name, (din, dout) in dims.items():
        key, wk, bk = jax.random.split(key, 3)
        bound = float(din) ** -0.5
        w = jax.random.uniform(wk, (din, dout), jnp.float32, -bound, bound)
        b = jax.random.uniform(bk, (dout,), jnp.float32, -bound, bound)
        params[name] = (w, b)
    return params


def make_ring_adjacency(n):
    """Undirected ring graph; returns D^-1/2 A D^-1/2 (no zero-degree nodes)."""
    # TODO(synk): CustomConv is not defined in the spec; plain sum aggregation
    # (raw adjacency) vs. normalized adjacency / self-loops may differ from the
    # original — the kernel accepts any dense (N, N) graph operator.
    idx = jnp.arange(n)
    a = jnp.zeros((n, n), jnp.float32)
    a = a.at[idx, (idx + 1) % n].set(1.0)
    a = a.at[idx, (idx - 1) % n].set(1.0)
    deg = a.sum(axis=1)
    d_inv_sqrt = 1.0 / jnp.sqrt(deg)
    return a * d_inv_sqrt[:, None] * d_inv_sqrt[None, :]


if __name__ == "__main__":
    key = jax.random.PRNGKey(0)
    pkey, fkey = jax.random.split(key)

    n_nodes = 16
    features = jax.random.normal(fkey, (n_nodes, 4), jnp.float32)
    a_hat = make_ring_adjacency(n_nodes)
    params = init_params(pkey)

    out = deepcust_forward(a_hat, features, params)
    jax.block_until_ready(out)
    assert out.shape == (n_nodes, 3), out.shape
    assert bool(jnp.all(jnp.isfinite(out)))

    ref = deepcust_reference(a_hat, features, params)
    assert bool(jnp.allclose(out, ref, rtol=2e-2, atol=2e-3)), (
        "max abs diff vs reference: %f" % float(jnp.max(jnp.abs(out - ref))))
    print("KERNEL_OK")
</pallas_src>

<mosaic_0001>
module attributes {stable_mosaic.version = 11 : i64} {
  func.func @_deepcust_kernel(%arg0: memref<16x16xbf16, #tpu.memory_space<vmem>>, %arg1: memref<16x4xbf16, #tpu.memory_space<vmem>>, %arg2: memref<4x64xbf16, #tpu.memory_space<vmem>>, %arg3: memref<1x64xf32, #tpu.memory_space<vmem>>, %arg4: memref<64x64xbf16, #tpu.memory_space<vmem>>, %arg5: memref<1x64xf32, #tpu.memory_space<vmem>>, %arg6: memref<64x3xbf16, #tpu.memory_space<vmem>>, %arg7: memref<1x3xf32, #tpu.memory_space<vmem>>, %arg8: memref<16x3xf32, #tpu.memory_space<vmem>>) attributes {dimension_semantics = [], scalar_prefetch = 0 : i64, scratch_operands = 0 : i64, tpu.core_type = #tpu.core_type<tc>} {
    %c0 = arith.constant 0 : index
    %c0_0 = arith.constant 0 : index
    %0 = vector.load %arg0[%c0, %c0_0] : memref<16x16xbf16, #tpu.memory_space<vmem>>, vector<16x16xbf16>
    %c0_1 = arith.constant 0 : index
    %c0_2 = arith.constant 0 : index
    %1 = vector.load %arg1[%c0_1, %c0_2] : memref<16x4xbf16, #tpu.memory_space<vmem>>, vector<16x4xbf16>
    %cst = arith.constant dense<0.000000e+00> : vector<16x4xf32>
    %2 = tpu.matmul %0, %1, %cst {dimension_numbers = #tpu.dot_dimension_numbers<[1], [0], [0], [1], [0, 0, 1, 1], [], []>} : vector<16x16xbf16>, vector<16x4xbf16>, vector<16x4xf32> -> vector<16x4xf32>
    %3 = arith.truncf %2 : vector<16x4xf32> to vector<16x4xbf16>
    %c0_3 = arith.constant 0 : index
    %c0_4 = arith.constant 0 : index
    %4 = vector.load %arg2[%c0_3, %c0_4] : memref<4x64xbf16, #tpu.memory_space<vmem>>, vector<4x64xbf16>
    %cst_5 = arith.constant dense<0.000000e+00> : vector<16x64xf32>
    %5 = tpu.matmul %3, %4, %cst_5 {dimension_numbers = #tpu.dot_dimension_numbers<[1], [0], [0], [1], [0, 0, 1, 1], [], []>} : vector<16x4xbf16>, vector<4x64xbf16>, vector<16x64xf32> -> vector<16x64xf32>
    %c0_6 = arith.constant 0 : index
    %c0_7 = arith.constant 0 : index
    %6 = vector.load %arg3[%c0_6, %c0_7] : memref<1x64xf32, #tpu.memory_space<vmem>>, vector<1x64xf32>
    %7 = vector.broadcast %6 : vector<1x64xf32> to vector<16x64xf32>
    %8 = arith.addf %5, %7 : vector<16x64xf32>
    %cst_8 = arith.constant 0.00999999977 : f32
    %9 = vector.broadcast %cst_8 : f32 to vector<16x64xf32>
    %10 = arith.mulf %9, %8 : vector<16x64xf32>
    %11 = arith.maximumf %8, %10 : vector<16x64xf32>
    %c0_9 = arith.constant 0 : index
    %c0_10 = arith.constant 0 : index
    %12 = vector.load %arg4[%c0_9, %c0_10] : memref<64x64xbf16, #tpu.memory_space<vmem>>, vector<64x64xbf16>
    %c0_11 = arith.constant 0 : index
    %c0_12 = arith.constant 0 : index
    %13 = vector.load %arg5[%c0_11, %c0_12] : memref<1x64xf32, #tpu.memory_space<vmem>>, vector<1x64xf32>
    %14 = vector.shape_cast %13 : vector<1x64xf32> to vector<1x64xf32>
    %15 = vector.broadcast %14 : vector<1x64xf32> to vector<16x64xf32>
    %16 = arith.truncf %11 : vector<16x64xf32> to vector<16x64xbf16>
    %cst_13 = arith.constant dense<0.000000e+00> : vector<16x64xf32>
    %17 = tpu.matmul %16, %12, %cst_13 {dimension_numbers = #tpu.dot_dimension_numbers<[1], [0], [0], [1], [0, 0, 1, 1], [], []>} : vector<16x64xbf16>, vector<64x64xbf16>, vector<16x64xf32> -> vector<16x64xf32>
    %18 = arith.truncf %17 : vector<16x64xf32> to vector<16x64xbf16>
    %cst_14 = arith.constant dense<0.000000e+00> : vector<16x64xf32>
    %19 = tpu.matmul %0, %18, %cst_14 {dimension_numbers = #tpu.dot_dimension_numbers<[1], [0], [0], [1], [0, 0, 1, 1], [], []>} : vector<16x16xbf16>, vector<16x64xbf16>, vector<16x64xf32> -> vector<16x64xf32>
    %20 = arith.addf %19, %15 : vector<16x64xf32>
    %cst_15 = arith.constant 0.00999999977 : f32
    %21 = vector.broadcast %cst_15 : f32 to vector<16x64xf32>
    %22 = arith.mulf %21, %20 : vector<16x64xf32>
    %23 = arith.maximumf %20, %22 : vector<16x64xf32>
    %24 = arith.truncf %23 : vector<16x64xf32> to vector<16x64xbf16>
    %cst_16 = arith.constant dense<0.000000e+00> : vector<16x64xf32>
    %25 = tpu.matmul %24, %12, %cst_16 {dimension_numbers = #tpu.dot_dimension_numbers<[1], [0], [0], [1], [0, 0, 1, 1], [], []>} : vector<16x64xbf16>, vector<64x64xbf16>, vector<16x64xf32> -> vector<16x64xf32>
    %26 = arith.truncf %25 : vector<16x64xf32> to vector<16x64xbf16>
    %cst_17 = arith.constant dense<0.000000e+00> : vector<16x64xf32>
    %27 = tpu.matmul %0, %26, %cst_17 {dimension_numbers = #tpu.dot_dimension_numbers<[1], [0], [0], [1], [0, 0, 1, 1], [], []>} : vector<16x16xbf16>, vector<16x64xbf16>, vector<16x64xf32> -> vector<16x64xf32>
    %28 = arith.addf %27, %15 : vector<16x64xf32>
    %cst_18 = arith.constant 0.00999999977 : f32
    %29 = vector.broadcast %cst_18 : f32 to vector<16x64xf32>
    %30 = arith.mulf %29, %28 : vector<16x64xf32>
    %31 = arith.maximumf %28, %30 : vector<16x64xf32>
    %32 = arith.truncf %31 : vector<16x64xf32> to vector<16x64xbf16>
    %cst_19 = arith.constant dense<0.000000e+00> : vector<16x64xf32>
    %33 = tpu.matmul %32, %12, %cst_19 {dimension_numbers = #tpu.dot_dimension_numbers<[1], [0], [0], [1], [0, 0, 1, 1], [], []>} : vector<16x64xbf16>, vector<64x64xbf16>, vector<16x64xf32> -> vector<16x64xf32>
    %34 = arith.truncf %33 : vector<16x64xf32> to vector<16x64xbf16>
    %cst_20 = arith.constant dense<0.000000e+00> : vector<16x64xf32>
    %35 = tpu.matmul %0, %34, %cst_20 {dimension_numbers = #tpu.dot_dimension_numbers<[1], [0], [0], [1], [0, 0, 1, 1], [], []>} : vector<16x16xbf16>, vector<16x64xbf16>, vector<16x64xf32> -> vector<16x64xf32>
    %36 = arith.addf %35, %15 : vector<16x64xf32>
    %cst_21 = arith.constant 0.00999999977 : f32
    %37 = vector.broadcast %cst_21 : f32 to vector<16x64xf32>
    %38 = arith.mulf %37, %36 : vector<16x64xf32>
    %39 = arith.maximumf %36, %38 : vector<16x64xf32>
    %40 = arith.truncf %39 : vector<16x64xf32> to vector<16x64xbf16>
    %cst_22 = arith.constant dense<0.000000e+00> : vector<16x64xf32>
    %41 = tpu.matmul %40, %12, %cst_22 {dimension_numbers = #tpu.dot_dimension_numbers<[1], [0], [0], [1], [0, 0, 1, 1], [], []>} : vector<16x64xbf16>, vector<64x64xbf16>, vector<16x64xf32> -> vector<16x64xf32>
    %42 = arith.truncf %41 : vector<16x64xf32> to vector<16x64xbf16>
    %cst_23 = arith.constant dense<0.000000e+00> : vector<16x64xf32>
    %43 = tpu.matmul %0, %42, %cst_23 {dimension_numbers = #tpu.dot_dimension_numbers<[1], [0], [0], [1], [0, 0, 1, 1], [], []>} : vector<16x16xbf16>, vector<16x64xbf16>, vector<16x64xf32> -> vector<16x64xf32>
    %44 = arith.addf %43, %15 : vector<16x64xf32>
    %cst_24 = arith.constant 0.00999999977 : f32
    %45 = vector.broadcast %cst_24 : f32 to vector<16x64xf32>
    %46 = arith.mulf %45, %44 : vector<16x64xf32>
    %47 = arith.maximumf %44, %46 : vector<16x64xf32>
    %48 = arith.truncf %47 : vector<16x64xf32> to vector<16x64xbf16>
    %cst_25 = arith.constant dense<0.000000e+00> : vector<16x64xf32>
    %49 = tpu.matmul %48, %12, %cst_25 {dimension_numbers = #tpu.dot_dimension_numbers<[1], [0], [0], [1], [0, 0, 1, 1], [], []>} : vector<16x64xbf16>, vector<64x64xbf16>, vector<16x64xf32> -> vector<16x64xf32>
    %50 = arith.truncf %49 : vector<16x64xf32> to vector<16x64xbf16>
    %cst_26 = arith.constant dense<0.000000e+00> : vector<16x64xf32>
    %51 = tpu.matmul %0, %50, %cst_26 {dimension_numbers = #tpu.dot_dimension_numbers<[1], [0], [0], [1], [0, 0, 1, 1], [], []>} : vector<16x16xbf16>, vector<16x64xbf16>, vector<16x64xf32> -> vector<16x64xf32>
    %52 = arith.addf %51, %15 : vector<16x64xf32>
    %cst_27 = arith.constant 0.00999999977 : f32
    %53 = vector.broadcast %cst_27 : f32 to vector<16x64xf32>
    %54 = arith.mulf %53, %52 : vector<16x64xf32>
    %55 = arith.maximumf %52, %54 : vector<16x64xf32>
    %56 = arith.truncf %55 : vector<16x64xf32> to vector<16x64xbf16>
    %cst_28 = arith.constant dense<0.000000e+00> : vector<16x64xf32>
    %57 = tpu.matmul %56, %12, %cst_28 {dimension_numbers = #tpu.dot_dimension_numbers<[1], [0], [0], [1], [0, 0, 1, 1], [], []>} : vector<16x64xbf16>, vector<64x64xbf16>, vector<16x64xf32> -> vector<16x64xf32>
    %58 = arith.truncf %57 : vector<16x64xf32> to vector<16x64xbf16>
    %cst_29 = arith.constant dense<0.000000e+00> : vector<16x64xf32>
    %59 = tpu.matmul %0, %58, %cst_29 {dimension_numbers = #tpu.dot_dimension_numbers<[1], [0], [0], [1], [0, 0, 1, 1], [], []>} : vector<16x16xbf16>, vector<16x64xbf16>, vector<16x64xf32> -> vector<16x64xf32>
    %60 = arith.addf %59, %15 : vector<16x64xf32>
    %cst_30 = arith.constant 0.00999999977 : f32
    %61 = vector.broadcast %cst_30 : f32 to vector<16x64xf32>
    %62 = arith.mulf %61, %60 : vector<16x64xf32>
    %63 = arith.maximumf %60, %62 : vector<16x64xf32>
    %64 = arith.truncf %63 : vector<16x64xf32> to vector<16x64xbf16>
    %cst_31 = arith.constant dense<0.000000e+00> : vector<16x64xf32>
    %65 = tpu.matmul %64, %12, %cst_31 {dimension_numbers = #tpu.dot_dimension_numbers<[1], [0], [0], [1], [0, 0, 1, 1], [], []>} : vector<16x64xbf16>, vector<64x64xbf16>, vector<16x64xf32> -> vector<16x64xf32>
    %66 = arith.truncf %65 : vector<16x64xf32> to vector<16x64xbf16>
    %cst_32 = arith.constant dense<0.000000e+00> : vector<16x64xf32>
    %67 = tpu.matmul %0, %66, %cst_32 {dimension_numbers = #tpu.dot_dimension_numbers<[1], [0], [0], [1], [0, 0, 1, 1], [], []>} : vector<16x16xbf16>, vector<16x64xbf16>, vector<16x64xf32> -> vector<16x64xf32>
    %68 = arith.addf %67, %15 : vector<16x64xf32>
    %cst_33 = arith.constant 0.00999999977 : f32
    %69 = vector.broadcast %cst_33 : f32 to vector<16x64xf32>
    %70 = arith.mulf %69, %68 : vector<16x64xf32>
    %71 = arith.maximumf %68, %70 : vector<16x64xf32>
    %72 = arith.truncf %71 : vector<16x64xf32> to vector<16x64xbf16>
    %c0_34 = arith.constant 0 : index
    %c0_35 = arith.constant 0 : index
    %73 = vector.load %arg6[%c0_34, %c0_35] : memref<64x3xbf16, #tpu.memory_space<vmem>>, vector<64x3xbf16>
    %cst_36 = arith.constant dense<0.000000e+00> : vector<16x3xf32>
    %74 = tpu.matmul %72, %73, %cst_36 {dimension_numbers = #tpu.dot_dimension_numbers<[1], [0], [0], [1], [0, 0, 1, 1], [], []>} : vector<16x64xbf16>, vector<64x3xbf16>, vector<16x3xf32> -> vector<16x3xf32>
    %75 = arith.truncf %74 : vector<16x3xf32> to vector<16x3xbf16>
    %cst_37 = arith.constant dense<0.000000e+00> : vector<16x3xf32>
    %76 = tpu.matmul %0, %75, %cst_37 {dimension_numbers = #tpu.dot_dimension_numbers<[1], [0], [0], [1], [0, 0, 1, 1], [], []>} : vector<16x16xbf16>, vector<16x3xbf16>, vector<16x3xf32> -> vector<16x3xf32>
    %c0_38 = arith.constant 0 : index
    %c0_39 = arith.constant 0 : index
    %77 = vector.load %arg7[%c0_38, %c0_39] : memref<1x3xf32, #tpu.memory_space<vmem>>, vector<1x3xf32>
    %78 = vector.broadcast %77 : vector<1x3xf32> to vector<16x3xf32>
    %79 = arith.addf %76, %78 : vector<16x3xf32>
    %c0_40 = arith.constant 0 : index
    %c0_41 = arith.constant 0 : index
    %80 = vector.load %arg8[%c0_40, %c0_41] : memref<16x3xf32, #tpu.memory_space<vmem>>, vector<16x3xf32>
    tpu.vector_store %arg8[%c0_40, %c0_41], %79 {strides = array<i32>} : memref<16x3xf32, #tpu.memory_space<vmem>>, vector<16x3xf32>,
    return
  }
}

</mosaic_0001>

<llo_original>
// kernel: tpu_custom_call.1
$region0: #{tpu_custom_call.1}
  #allocation0 [shape = 'u32[]', space=smem, size = 0x4, offset = 0x4, fixed_abs, tag = 'smem constant byte address 0x4 - core index']
  #allocation1 [shape = 'u32[144,128]{1,0:T(1,128)}', space=vmem, size = 0x12000, scoped, tag = 'internal scratch']
  %s0 = inlined_call_operand.vmem [shape: bf16[16,16], index: 0, kind: input, shape index: {}]
  %s1 = inlined_call_operand.vmem [shape: bf16[16,4], index: 1, kind: input, shape index: {}]
  %s2 = inlined_call_operand.vmem [shape: bf16[4,64], index: 2, kind: input, shape index: {}]
  %s3 = inlined_call_operand.vmem [shape: f32[1,64], index: 3, kind: input, shape index: {}]
  %s4 = inlined_call_operand.vmem [shape: bf16[64,64], index: 4, kind: input, shape index: {}]
  %s5 = inlined_call_operand.vmem [shape: f32[1,64], index: 5, kind: input, shape index: {}]
  %s6 = inlined_call_operand.vmem [shape: bf16[64,3], index: 6, kind: input, shape index: {}]
  %s7 = inlined_call_operand.vmem [shape: f32[1,3], index: 7, kind: input, shape index: {}]
  %s8 = inlined_call_operand.vmem [shape: f32[16,3], index: 8, kind: output, shape index: {}]
  %s9 = sld [smem:[#allocation0]]
  $region42: #{tpu_custom_call.1} parent=0
    _
  %s11 = ssub.s32 1, %s9
  %s12 = scalar_select 0, %s11, %s9
  // Predicated region
  $region2: #{tpu_custom_call.1} parent=0 // pred_check
    _
  $region3: #{tpu_custom_call.1} parent=0 // pred_check_branch
    %14 = sbr.rel (0) target = $region5
  $region4: #{tpu_custom_call.1} parent=0 // pred_region
    _
  $region5: #{tpu_custom_call.1} parent=0 // pred_fallthru
    _
  // Predicated region
  $region6: #{tpu_custom_call.1} parent=0 // pred_check
    _
  $region7: #{tpu_custom_call.1} parent=0 // pred_check_branch
    %16 = sbr.rel (0) target = $region9
  $region8: #{tpu_custom_call.1} parent=0 // pred_region
    _
  $region9: #{tpu_custom_call.1} parent=0 // pred_fallthru
    _
  // Predicated region
  $region10: #{tpu_custom_call.1} parent=0 // pred_check
    _
  $region11: #{tpu_custom_call.1} parent=0 // pred_check_branch
    %18 = sbr.rel (0) target = $region13
  $region12: #{tpu_custom_call.1} parent=0 // pred_region
    _
  $region13: #{tpu_custom_call.1} parent=0 // pred_fallthru
    _
  // Predicated region
  $region14: #{tpu_custom_call.1} parent=0 // pred_check
    _
  $region15: #{tpu_custom_call.1} parent=0 // pred_check_branch
    %20 = sbr.rel (0) target = $region17
  $region16: #{tpu_custom_call.1} parent=0 // pred_region
    _
  $region17: #{tpu_custom_call.1} parent=0 // pred_fallthru
    _
  // Predicated region
  $region18: #{tpu_custom_call.1} parent=0 // pred_check
    _
  $region19: #{tpu_custom_call.1} parent=0 // pred_check_branch
    %22 = sbr.rel (0) target = $region21
  $region20: #{tpu_custom_call.1} parent=0 // pred_region
    _
  $region21: #{tpu_custom_call.1} parent=0 // pred_fallthru
    _
  // Predicated region
  $region22: #{tpu_custom_call.1} parent=0 // pred_check
    _
  $region23: #{tpu_custom_call.1} parent=0 // pred_check_branch
    %24 = sbr.rel (0) target = $region25
  $region24: #{tpu_custom_call.1} parent=0 // pred_region
    _
  $region25: #{tpu_custom_call.1} parent=0 // pred_fallthru
    _
  // Predicated region
  $region26: #{tpu_custom_call.1} parent=0 // pred_check
    _
  $region27: #{tpu_custom_call.1} parent=0 // pred_check_branch
    %26 = sbr.rel (0) target = $region29
  $region28: #{tpu_custom_call.1} parent=0 // pred_region
    _
  $region29: #{tpu_custom_call.1} parent=0 // pred_fallthru
    _
  // Predicated region
  $region30: #{tpu_custom_call.1} parent=0 // pred_check
    _
  $region31: #{tpu_custom_call.1} parent=0 // pred_check_branch
    %28 = sbr.rel (0) target = $region33
  $region32: #{tpu_custom_call.1} parent=0 // pred_region
    _
  $region33: #{tpu_custom_call.1} parent=0 // pred_fallthru
    _
  %v30 = vld [vmem:[%s0] sm:$0xf]
  %v31 = vld [vmem:[%s0 + $0x4] sm:$0xf]
  %v32 = vld [vmem:[%s1] sm:$0xf]
  %v33 = vld [vmem:[%s1 + $0x4] sm:$0xf]
  %v36 = vunpack.c.l.b16 %v30
  %v37 = vunpack.c.l.b16 %v31
  %v38 = vpack.c.b16 %v37, %v36
  %v41 = vunpack.c.l.b16 %v32
  %v42 = vunpack.c.l.b16 %v33
  %v43 = vpack.c.b16 %v42, %v41
  %vm45 = vcmask 130048
  %v47 = vsel %vm45, %v38, 0
  %49 = vmatprep.subr.bf16.mxu0 0
  %50 = vmatpush1.bf16.msra.mxu0 %v43
  %51 = vmatprep.subr.bf16.mxu0 0
  %52 = vmatpush1.bf16.msra.mxu0 0
  %53 = vmatprep.subr.bf16.mxu0 0
  %54 = vmatpush1.bf16.msra.mxu0 0
  %55 = vmatprep.subr.bf16.mxu0 0
  %56 = vmatpush1.bf16.msra.mxu0 0
  %57 = vmatprep.subr.bf16.mxu0 0
  %58 = vmatpush1.bf16.msra.mxu0 0
  %59 = vmatprep.subr.bf16.mxu0 0
  %60 = vmatpush1.bf16.msra.mxu0 0
  %61 = vmatprep.subr.bf16.mxu0 0
  %62 = vmatpush1.bf16.msra.mxu0 0
  %63 = vmatprep.subr.bf16.mxu0 0
  %64 = vmatpush1.bf16.msra.mxu0 0
  %65 = vmatprep.subr.bf16.mxu0 0
  %66 = vmatpush1.bf16.msra.mxu0 0
  %67 = vmatprep.subr.bf16.mxu0 0
  %68 = vmatpush1.bf16.msra.mxu0 0
  %69 = vmatprep.subr.bf16.mxu0 0
  %70 = vmatpush1.bf16.msra.mxu0 0
  %71 = vmatprep.subr.bf16.mxu0 0
  %72 = vmatpush1.bf16.msra.mxu0 0
  %73 = vmatprep.subr.bf16.mxu0 0
  %74 = vmatpush1.bf16.msra.mxu0 0
  %75 = vmatprep.subr.bf16.mxu0 0
  %76 = vmatpush1.bf16.msra.mxu0 0
  %77 = vmatprep.subr.bf16.mxu0 0
  %78 = vmatpush1.bf16.msra.mxu0 0
  %79 = vmatprep.subr.bf16.mxu0 0
  %80 = vmatpush1.bf16.msra.mxu0 0
  %81 = vmatprep.mubr.bf16.mxu0 0
  %82 = vmatmul.mubr.bf16.gmra.mrb[0].mxu0 %v47
  %v83 = vpop.f32.mrb[0].mxu0
  %v84 = vadd.f32 0.0, %v83
  %v85 = vpop.f32.mrb[0].mxu0
  %v86 = vpop.f32.mrb[0].mxu0
  %v87 = vadd.f32 0.0, %v86
  %v88 = vpop.f32.mrb[0].mxu0
  %89 = vdwg.mxu0
  %v90 = vpack.c.bf16 %v87, %v84
  %v91 = vld [vmem:[%s2] sm:$0x3]
  %v92 = vld [vmem:[%s3] sm:$0x1]
  %v94 = vlaneseq
  %v95 = vshrl.u32 %v94, 7
  %v96 = vsub.s32 0, %v95
  %v97 = vrot.slane %v92, %v96
  %vm99 = vcmask 31744
  %v101 = vsel %vm99, %v90, 0
  %vm103 = vcmask 1041408
  %v105 = vsel %vm103, %v91, 0
  %107 = vmatprep.subr.bf16.mxu0 0
  %108 = vmatpush1.bf16.msra.mxu0 %v105
  %109 = vmatprep.subr.bf16.mxu0 0
  %110 = vmatpush1.bf16.msra.mxu0 0
  %111 = vmatprep.subr.bf16.mxu0 0
  %112 = vmatpush1.bf16.msra.mxu0 0
  %113 = vmatprep.subr.bf16.mxu0 0
  %114 = vmatpush1.bf16.msra.mxu0 0
  %115 = vmatprep.subr.bf16.mxu0 0
  %116 = vmatpush1.bf16.msra.mxu0 0
  %117 = vmatprep.subr.bf16.mxu0 0
  %118 = vmatpush1.bf16.msra.mxu0 0
  %119 = vmatprep.subr.bf16.mxu0 0
  %120 = vmatpush1.bf16.msra.mxu0 0
  %121 = vmatprep.subr.bf16.mxu0 0
  %122 = vmatpush1.bf16.msra.mxu0 0
  %123 = vmatprep.subr.bf16.mxu0 0
  %124 = vmatpush1.bf16.msra.mxu0 0
  %125 = vmatprep.subr.bf16.mxu0 0
  %126 = vmatpush1.bf16.msra.mxu0 0
  %127 = vmatprep.subr.bf16.mxu0 0
  %128 = vmatpush1.bf16.msra.mxu0 0
  %129 = vmatprep.subr.bf16.mxu0 0
  %130 = vmatpush1.bf16.msra.mxu0 0
  %131 = vmatprep.subr.bf16.mxu0 0
  %132 = vmatpush1.bf16.msra.mxu0 0
  %133 = vmatprep.subr.bf16.mxu0 0
  %134 = vmatpush1.bf16.msra.mxu0 0
  %135 = vmatprep.subr.bf16.mxu0 0
  %136 = vmatpush1.bf16.msra.mxu0 0
  %137 = vmatprep.subr.bf16.mxu0 0
  %138 = vmatpush1.bf16.msra.mxu0 0
  %139 = vmatprep.mubr.bf16.mxu0 0
  %140 = vmatmul.mubr.bf16.gmra.mrb[0].mxu0 %v101
  %v141 = vpop.f32.mrb[0].mxu0
  %v142 = vadd.f32 %v97, %v141
  %v143 = vpop.f32.mrb[0].mxu0
  %v144 = vpop.f32.mrb[0].mxu0
  %v145 = vadd.f32 %v97, %v144
  %v146 = vpop.f32.mrb[0].mxu0
  %147 = vdwg.mxu0
  %v148 = vmul.f32 %v142, 0.01
  %v149 = vmul.f32 %v145, 0.01
  %v150 = vmax.f32 %v142, %v148
  %v151 = vmax.f32 %v145, %v149
  %v152 = vld [vmem:[%s4] sm:$0xf]
  %v153 = vld [vmem:[%s4 + $0x4] sm:$0xf]
  %v154 = vld [vmem:[%s4 + $0x8] sm:$0xf]
  %v155 = vld [vmem:[%s4 + $0xc] sm:$0xf]
  %v156 = vld [vmem:[%s4 + $0x10] sm:$0xf]
  %v157 = vld [vmem:[%s4 + $0x14] sm:$0xf]
  %v158 = vld [vmem:[%s4 + $0x18] sm:$0xf]
  %v159 = vld [vmem:[%s4 + $0x1c] sm:$0xf]
  %v160 = vld [vmem:[%s5] sm:$0x1]
  %v162 = vlaneseq
  %v163 = vshrl.u32 %v162, 7
  %v164 = vsub.s32 0, %v163
  %v165 = vrot.slane %v160, %v164
  %v167 = vpack.c.bf16 %v151, %v150
  %v176 = vunpack.c.l.b16 %v152
  %v177 = vunpack.c.l.b16 %v153
  %v178 = vunpack.c.l.b16 %v154
  %v179 = vunpack.c.l.b16 %v155
  %v180 = vunpack.c.l.b16 %v156
  %v181 = vunpack.c.l.b16 %v157
  %v182 = vunpack.c.l.b16 %v158
  %v183 = vunpack.c.l.b16 %v159
  %v184 = vpack.c.b16 %v177, %v176
  %v185 = vpack.c.b16 %v179, %v178
  %v186 = vpack.c.b16 %v181, %v180
  %v187 = vpack.c.b16 %v183, %v182
  %vm192 = vcmask 523264
  %v194 = vsel %vm192, %v167, 0
  %196 = vmatprep.subr.bf16.mxu0 0
  %197 = vmatpush1.bf16.msra.mxu0 %v184
  %198 = vmatprep.subr.bf16.mxu0 0
  %199 = vmatpush1.bf16.msra.mxu0 %v185
  %200 = vmatprep.subr.bf16.mxu0 0
  %201 = vmatpush1.bf16.msra.mxu0 %v186
  %202 = vmatprep.subr.bf16.mxu0 0
  %203 = vmatpush1.bf16.msra.mxu0 %v187
  %204 = vmatprep.subr.bf16.mxu0 0
  %205 = vmatpush1.bf16.msra.mxu0 0
  %206 = vmatprep.subr.bf16.mxu0 0
  %207 = vmatpush1.bf16.msra.mxu0 0
  %208 = vmatprep.subr.bf16.mxu0 0
  %209 = vmatpush1.bf16.msra.mxu0 0
  %210 = vmatprep.subr.bf16.mxu0 0
  %211 = vmatpush1.bf16.msra.mxu0 0
  %212 = vmatprep.subr.bf16.mxu0 0
  %213 = vmatpush1.bf16.msra.mxu0 0
  %214 = vmatprep.subr.bf16.mxu0 0
  %215 = vmatpush1.bf16.msra.mxu0 0
  %216 = vmatprep.subr.bf16.mxu0 0
  %217 = vmatpush1.bf16.msra.mxu0 0
  %218 = vmatprep.subr.bf16.mxu0 0
  %219 = vmatpush1.bf16.msra.mxu0 0
  %220 = vmatprep.subr.bf16.mxu0 0
  %221 = vmatpush1.bf16.msra.mxu0 0
  %222 = vmatprep.subr.bf16.mxu0 0
  %223 = vmatpush1.bf16.msra.mxu0 0
  %224 = vmatprep.subr.bf16.mxu0 0
  %225 = vmatpush1.bf16.msra.mxu0 0
  %226 = vmatprep.subr.bf16.mxu0 0
  %227 = vmatpush1.bf16.msra.mxu0 0
  %228 = vmatprep.mubr.bf16.mxu0 0
  %229 = vmatmul.mubr.bf16.gmra.mrb[0].mxu0 %v194
  %v230 = vpop.f32.mrb[0].mxu0
  %v231 = vadd.f32 0.0, %v230
  %v232 = vpop.f32.mrb[0].mxu0
  %v233 = vpop.f32.mrb[0].mxu0
  %v234 = vadd.f32 0.0, %v233
  %v235 = vpop.f32.mrb[0].mxu0
  %236 = vdwg.mxu0
  %v237 = vpack.c.bf16 %v234, %v231
  %238 = vmatprep.subr.bf16.mxu0 0
  %239 = vmatpush1.bf16.msra.mxu0 %v237
  %240 = vmatprep.subr.bf16.mxu0 0
  %241 = vmatpush1.bf16.msra.mxu0 0
  %242 = vmatprep.subr.bf16.mxu0 0
  %243 = vmatpush1.bf16.msra.mxu0 0
  %244 = vmatprep.subr.bf16.mxu0 0
  %245 = vmatpush1.bf16.msra.mxu0 0
  %246 = vmatprep.subr.bf16.mxu0 0
  %247 = vmatpush1.bf16.msra.mxu0 0
  %248 = vmatprep.subr.bf16.mxu0 0
  %249 = vmatpush1.bf16.msra.mxu0 0
  %250 = vmatprep.subr.bf16.mxu0 0
  %251 = vmatpush1.bf16.msra.mxu0 0
  %252 = vmatprep.subr.bf16.mxu0 0
  %253 = vmatpush1.bf16.msra.mxu0 0
  %254 = vmatprep.subr.bf16.mxu0 0
  %255 = vmatpush1.bf16.msra.mxu0 0
  %256 = vmatprep.subr.bf16.mxu0 0
  %257 = vmatpush1.bf16.msra.mxu0 0
  %258 = vmatprep.subr.bf16.mxu0 0
  %259 = vmatpush1.bf16.msra.mxu0 0
  %260 = vmatprep.subr.bf16.mxu0 0
  %261 = vmatpush1.bf16.msra.mxu0 0
  %262 = vmatprep.subr.bf16.mxu0 0
  %263 = vmatpush1.bf16.msra.mxu0 0
  %264 = vmatprep.subr.bf16.mxu0 0
  %265 = vmatpush1.bf16.msra.mxu0 0
  %266 = vmatprep.subr.bf16.mxu0 0
  %267 = vmatpush1.bf16.msra.mxu0 0
  %268 = vmatprep.subr.bf16.mxu0 0
  %269 = vmatpush1.bf16.msra.mxu0 0
  %270 = vmatprep.mubr.bf16.mxu0 0
  %271 = vmatmul.mubr.bf16.gmra.mrb[0].mxu0 %v47
  %v272 = vpop.f32.mrb[0].mxu0
  %v273 = vadd.f32 %v165, %v272
  %v274 = vpop.f32.mrb[0].mxu0
  %v275 = vpop.f32.mrb[0].mxu0
  %v276 = vadd.f32 %v165, %v275
  %v277 = vpop.f32.mrb[0].mxu0
  %278 = vdwg.mxu0
  %v279 = vmul.f32 %v273, 0.01
  %v280 = vmul.f32 %v276, 0.01
  %v281 = vmax.f32 %v273, %v279
  %v282 = vmax.f32 %v276, %v280
  %v283 = vpack.c.bf16 %v282, %v281
  %v285 = vsel %vm192, %v283, 0
  %287 = vmatprep.subr.bf16.mxu0 0
  %288 = vmatpush1.bf16.msra.mxu0 %v184
  %289 = vmatprep.subr.bf16.mxu0 0
  %290 = vmatpush1.bf16.msra.mxu0 %v185
  %291 = vmatprep.subr.bf16.mxu0 0
  %292 = vmatpush1.bf16.msra.mxu0 %v186
  %293 = vmatprep.subr.bf16.mxu0 0
  %294 = vmatpush1.bf16.msra.mxu0 %v187
  %295 = vmatprep.subr.bf16.mxu0 0
  %296 = vmatpush1.bf16.msra.mxu0 0
  %297 = vmatprep.subr.bf16.mxu0 0
  %298 = vmatpush1.bf16.msra.mxu0 0
  %299 = vmatprep.subr.bf16.mxu0 0
  %300 = vmatpush1.bf16.msra.mxu0 0
  %301 = vmatprep.subr.bf16.mxu0 0
  %302 = vmatpush1.bf16.msra.mxu0 0
  %303 = vmatprep.subr.bf16.mxu0 0
  %304 = vmatpush1.bf16.msra.mxu0 0
  %305 = vmatprep.subr.bf16.mxu0 0
  %306 = vmatpush1.bf16.msra.mxu0 0
  %307 = vmatprep.subr.bf16.mxu0 0
  %308 = vmatpush1.bf16.msra.mxu0 0
  %309 = vmatprep.subr.bf16.mxu0 0
  %310 = vmatpush1.bf16.msra.mxu0 0
  %311 = vmatprep.subr.bf16.mxu0 0
  %312 = vmatpush1.bf16.msra.mxu0 0
  %313 = vmatprep.subr.bf16.mxu0 0
  %314 = vmatpush1.bf16.msra.mxu0 0
  %315 = vmatprep.subr.bf16.mxu0 0
  %316 = vmatpush1.bf16.msra.mxu0 0
  %317 = vmatprep.subr.bf16.mxu0 0
  %318 = vmatpush1.bf16.msra.mxu0 0
  %319 = vmatprep.mubr.bf16.mxu0 0
  %320 = vmatmul.mubr.bf16.gmra.mrb[0].mxu0 %v285
  %v321 = vpop.f32.mrb[0].mxu0
  %v322 = vadd.f32 0.0, %v321
  %v323 = vpop.f32.mrb[0].mxu0
  %v324 = vpop.f32.mrb[0].mxu0
  %v325 = vadd.f32 0.0, %v324
  %v326 = vpop.f32.mrb[0].mxu0
  %327 = vdwg.mxu0
  %v328 = vpack.c.bf16 %v325, %v322
  %329 = vmatprep.subr.bf16.mxu0 0
  %330 = vmatpush1.bf16.msra.mxu0 %v328
  %331 = vmatprep.subr.bf16.mxu0 0
  %332 = vmatpush1.bf16.msra.mxu0 0
  %333 = vmatprep.subr.bf16.mxu0 0
  %334 = vmatpush1.bf16.msra.mxu0 0
  %335 = vmatprep.subr.bf16.mxu0 0
  %336 = vmatpush1.bf16.msra.mxu0 0
  %337 = vmatprep.subr.bf16.mxu0 0
  %338 = vmatpush1.bf16.msra.mxu0 0
  %339 = vmatprep.subr.bf16.mxu0 0
  %340 = vmatpush1.bf16.msra.mxu0 0
  %341 = vmatprep.subr.bf16.mxu0 0
  %342 = vmatpush1.bf16.msra.mxu0 0
  %343 = vmatprep.subr.bf16.mxu0 0
  %344 = vmatpush1.bf16.msra.mxu0 0
  %345 = vmatprep.subr.bf16.mxu0 0
  %346 = vmatpush1.bf16.msra.mxu0 0
  %347 = vmatprep.subr.bf16.mxu0 0
  %348 = vmatpush1.bf16.msra.mxu0 0
  %349 = vmatprep.subr.bf16.mxu0 0
  %350 = vmatpush1.bf16.msra.mxu0 0
  %351 = vmatprep.subr.bf16.mxu0 0
  %352 = vmatpush1.bf16.msra.mxu0 0
  %353 = vmatprep.subr.bf16.mxu0 0
  %354 = vmatpush1.bf16.msra.mxu0 0
  %355 = vmatprep.subr.bf16.mxu0 0
  %356 = vmatpush1.bf16.msra.mxu0 0
  %357 = vmatprep.subr.bf16.mxu0 0
  %358 = vmatpush1.bf16.msra.mxu0 0
  %359 = vmatprep.subr.bf16.mxu0 0
  %360 = vmatpush1.bf16.msra.mxu0 0
  %361 = vmatprep.mubr.bf16.mxu0 0
  %362 = vmatmul.mubr.bf16.gmra.mrb[0].mxu0 %v47
  %v363 = vpop.f32.mrb[0].mxu0
  %v364 = vadd.f32 %v165, %v363
  %v365 = vpop.f32.mrb[0].mxu0
  %v366 = vpop.f32.mrb[0].mxu0
  %v367 = vadd.f32 %v165, %v366
  %v368 = vpop.f32.mrb[0].mxu0
  %369 = vdwg.mxu0
  %v370 = vmul.f32 %v364, 0.01
  %v371 = vmul.f32 %v367, 0.01
  %v372 = vmax.f32 %v364, %v370
  %v373 = vmax.f32 %v367, %v371
  %v374 = vpack.c.bf16 %v373, %v372
  %v376 = vsel %vm192, %v374, 0
  %378 = vmatprep.subr.bf16.mxu0 0
  %379 = vmatpush1.bf16.msra.mxu0 %v184
  %380 = vmatprep.subr.bf16.mxu0 0
  %381 = vmatpush1.bf16.msra.mxu0 %v185
  %382 = vmatprep.subr.bf16.mxu0 0
  %383 = vmatpush1.bf16.msra.mxu0 %v186
  %384 = vmatprep.subr.bf16.mxu0 0
  %385 = vmatpush1.bf16.msra.mxu0 %v187
  %386 = vmatprep.subr.bf16.mxu0 0
  %387 = vmatpush1.bf16.msra.mxu0 0
  %388 = vmatprep.subr.bf16.mxu0 0
  %389 = vmatpush1.bf16.msra.mxu0 0
  %390 = vmatprep.subr.bf16.mxu0 0
  %391 = vmatpush1.bf16.msra.mxu0 0
  %392 = vmatprep.subr.bf16.mxu0 0
  %393 = vmatpush1.bf16.msra.mxu0 0
  %394 = vmatprep.subr.bf16.mxu0 0
  %395 = vmatpush1.bf16.msra.mxu0 0
  %396 = vmatprep.subr.bf16.mxu0 0
  %397 = vmatpush1.bf16.msra.mxu0 0
  %398 = vmatprep.subr.bf16.mxu0 0
  %399 = vmatpush1.bf16.msra.mxu0 0
  %400 = vmatprep.subr.bf16.mxu0 0
  %401 = vmatpush1.bf16.msra.mxu0 0
  %402 = vmatprep.subr.bf16.mxu0 0
  %403 = vmatpush1.bf16.msra.mxu0 0
  %404 = vmatprep.subr.bf16.mxu0 0
  %405 = vmatpush1.bf16.msra.mxu0 0
  %406 = vmatprep.subr.bf16.mxu0 0
  %407 = vmatpush1.bf16.msra.mxu0 0
  %408 = vmatprep.subr.bf16.mxu0 0
  %409 = vmatpush1.bf16.msra.mxu0 0
  %410 = vmatprep.mubr.bf16.mxu0 0
  %411 = vmatmul.mubr.bf16.gmra.mrb[0].mxu0 %v376
  %v412 = vpop.f32.mrb[0].mxu0
  %v413 = vadd.f32 0.0, %v412
  %v414 = vpop.f32.mrb[0].mxu0
  %v415 = vpop.f32.mrb[0].mxu0
  %v416 = vadd.f32 0.0, %v415
  %v417 = vpop.f32.mrb[0].mxu0
  %418 = vdwg.mxu0
  %v419 = vpack.c.bf16 %v416, %v413
  %420 = vmatprep.subr.bf16.mxu0 0
  %421 = vmatpush1.bf16.msra.mxu0 %v419
  %422 = vmatprep.subr.bf16.mxu0 0
  %423 = vmatpush1.bf16.msra.mxu0 0
  %424 = vmatprep.subr.bf16.mxu0 0
  %425 = vmatpush1.bf16.msra.mxu0 0
  %426 = vmatprep.subr.bf16.mxu0 0
  %427 = vmatpush1.bf16.msra.mxu0 0
  %428 = vmatprep.subr.bf16.mxu0 0
  %429 = vmatpush1.bf16.msra.mxu0 0
  %430 = vmatprep.subr.bf16.mxu0 0
  %431 = vmatpush1.bf16.msra.mxu0 0
  %432 = vmatprep.subr.bf16.mxu0 0
  %433 = vmatpush1.bf16.msra.mxu0 0
  %434 = vmatprep.subr.bf16.mxu0 0
  %435 = vmatpush1.bf16.msra.mxu0 0
  %436 = vmatprep.subr.bf16.mxu0 0
  %437 = vmatpush1.bf16.msra.mxu0 0
  %438 = vmatprep.subr.bf16.mxu0 0
  %439 = vmatpush1.bf16.msra.mxu0 0
  %440 = vmatprep.subr.bf16.mxu0 0
  %441 = vmatpush1.bf16.msra.mxu0 0
  %442 = vmatprep.subr.bf16.mxu0 0
  %443 = vmatpush1.bf16.msra.mxu0 0
  %444 = vmatprep.subr.bf16.mxu0 0
  %445 = vmatpush1.bf16.msra.mxu0 0
  %446 = vmatprep.subr.bf16.mxu0 0
  %447 = vmatpush1.bf16.msra.mxu0 0
  %448 = vmatprep.subr.bf16.mxu0 0
  %449 = vmatpush1.bf16.msra.mxu0 0
  %450 = vmatprep.subr.bf16.mxu0 0
  %451 = vmatpush1.bf16.msra.mxu0 0
  %452 = vmatprep.mubr.bf16.mxu0 0
  %453 = vmatmul.mubr.bf16.gmra.mrb[0].mxu0 %v47
  %v454 = vpop.f32.mrb[0].mxu0
  %v455 = vadd.f32 %v165, %v454
  %v456 = vpop.f32.mrb[0].mxu0
  %v457 = vpop.f32.mrb[0].mxu0
  %v458 = vadd.f32 %v165, %v457
  %v459 = vpop.f32.mrb[0].mxu0
  %460 = vdwg.mxu0
  %v461 = vmul.f32 %v455, 0.01
  %v462 = vmul.f32 %v458, 0.01
  %v463 = vmax.f32 %v455, %v461
  %v464 = vmax.f32 %v458, %v462
  %v465 = vpack.c.bf16 %v464, %v463
  %v467 = vsel %vm192, %v465, 0
  %469 = vmatprep.subr.bf16.mxu0 0
  %470 = vmatpush1.bf16.msra.mxu0 %v184
  %471 = vmatprep.subr.bf16.mxu0 0
  %472 = vmatpush1.bf16.msra.mxu0 %v185
  %473 = vmatprep.subr.bf16.mxu0 0
  %474 = vmatpush1.bf16.msra.mxu0 %v186
  %475 = vmatprep.subr.bf16.mxu0 0
  %476 = vmatpush1.bf16.msra.mxu0 %v187
  %477 = vmatprep.subr.bf16.mxu0 0
  %478 = vmatpush1.bf16.msra.mxu0 0
  %479 = vmatprep.subr.bf16.mxu0 0
  %480 = vmatpush1.bf16.msra.mxu0 0
  %481 = vmatprep.subr.bf16.mxu0 0
  %482 = vmatpush1.bf16.msra.mxu0 0
  %483 = vmatprep.subr.bf16.mxu0 0
  %484 = vmatpush1.bf16.msra.mxu0 0
  %485 = vmatprep.subr.bf16.mxu0 0
  %486 = vmatpush1.bf16.msra.mxu0 0
  %487 = vmatprep.subr.bf16.mxu0 0
  %488 = vmatpush1.bf16.msra.mxu0 0
  %489 = vmatprep.subr.bf16.mxu0 0
  %490 = vmatpush1.bf16.msra.mxu0 0
  %491 = vmatprep.subr.bf16.mxu0 0
  %492 = vmatpush1.bf16.msra.mxu0 0
  %493 = vmatprep.subr.bf16.mxu0 0
  %494 = vmatpush1.bf16.msra.mxu0 0
  %495 = vmatprep.subr.bf16.mxu0 0
  %496 = vmatpush1.bf16.msra.mxu0 0
  %497 = vmatprep.subr.bf16.mxu0 0
  %498 = vmatpush1.bf16.msra.mxu0 0
  %499 = vmatprep.subr.bf16.mxu0 0
  %500 = vmatpush1.bf16.msra.mxu0 0
  %501 = vmatprep.mubr.bf16.mxu0 0
  %502 = vmatmul.mubr.bf16.gmra.mrb[0].mxu0 %v467
  %v503 = vpop.f32.mrb[0].mxu0
  %v504 = vadd.f32 0.0, %v503
  %v505 = vpop.f32.mrb[0].mxu0
  %v506 = vpop.f32.mrb[0].mxu0
  %v507 = vadd.f32 0.0, %v506
  %v508 = vpop.f32.mrb[0].mxu0
  %509 = vdwg.mxu0
  %v510 = vpack.c.bf16 %v507, %v504
  %511 = vmatprep.subr.bf16.mxu0 0
  %512 = vmatpush1.bf16.msra.mxu0 %v510
  %513 = vmatprep.subr.bf16.mxu0 0
  %514 = vmatpush1.bf16.msra.mxu0 0
  %515 = vmatprep.subr.bf16.mxu0 0
  %516 = vmatpush1.bf16.msra.mxu0 0
  %517 = vmatprep.subr.bf16.mxu0 0
  %518 = vmatpush1.bf16.msra.mxu0 0
  %519 = vmatprep.subr.bf16.mxu0 0
  %520 = vmatpush1.bf16.msra.mxu0 0
  %521 = vmatprep.subr.bf16.mxu0 0
  %522 = vmatpush1.bf16.msra.mxu0 0
  %523 = vmatprep.subr.bf16.mxu0 0
  %524 = vmatpush1.bf16.msra.mxu0 0
  %525 = vmatprep.subr.bf16.mxu0 0
  %526 = vmatpush1.bf16.msra.mxu0 0
  %527 = vmatprep.subr.bf16.mxu0 0
  %528 = vmatpush1.bf16.msra.mxu0 0
  %529 = vmatprep.subr.bf16.mxu0 0
  %530 = vmatpush1.bf16.msra.mxu0 0
  %531 = vmatprep.subr.bf16.mxu0 0
  %532 = vmatpush1.bf16.msra.mxu0 0
  %533 = vmatprep.subr.bf16.mxu0 0
  %534 = vmatpush1.bf16.msra.mxu0 0
  %535 = vmatprep.subr.bf16.mxu0 0
  %536 = vmatpush1.bf16.msra.mxu0 0
  %537 = vmatprep.subr.bf16.mxu0 0
  %538 = vmatpush1.bf16.msra.mxu0 0
  %539 = vmatprep.subr.bf16.mxu0 0
  %540 = vmatpush1.bf16.msra.mxu0 0
  %541 = vmatprep.subr.bf16.mxu0 0
  %542 = vmatpush1.bf16.msra.mxu0 0
  %543 = vmatprep.mubr.bf16.mxu0 0
  %544 = vmatmul.mubr.bf16.gmra.mrb[0].mxu0 %v47
  %v545 = vpop.f32.mrb[0].mxu0
  %v546 = vadd.f32 %v165, %v545
  %v547 = vpop.f32.mrb[0].mxu0
  %v548 = vpop.f32.mrb[0].mxu0
  %v549 = vadd.f32 %v165, %v548
  %v550 = vpop.f32.mrb[0].mxu0
  %551 = vdwg.mxu0
  %v552 = vmul.f32 %v546, 0.01
  %v553 = vmul.f32 %v549, 0.01
  %v554 = vmax.f32 %v546, %v552
  %v555 = vmax.f32 %v549, %v553
  %v556 = vpack.c.bf16 %v555, %v554
  %v558 = vsel %vm192, %v556, 0
  %560 = vmatprep.subr.bf16.mxu0 0
  %561 = vmatpush1.bf16.msra.mxu0 %v184
  %562 = vmatprep.subr.bf16.mxu0 0
  %563 = vmatpush1.bf16.msra.mxu0 %v185
  %564 = vmatprep.subr.bf16.mxu0 0
  %565 = vmatpush1.bf16.msra.mxu0 %v186
  %566 = vmatprep.subr.bf16.mxu0 0
  %567 = vmatpush1.bf16.msra.mxu0 %v187
  %568 = vmatprep.subr.bf16.mxu0 0
  %569 = vmatpush1.bf16.msra.mxu0 0
  %570 = vmatprep.subr.bf16.mxu0 0
  %571 = vmatpush1.bf16.msra.mxu0 0
  %572 = vmatprep.subr.bf16.mxu0 0
  %573 = vmatpush1.bf16.msra.mxu0 0
  %574 = vmatprep.subr.bf16.mxu0 0
  %575 = vmatpush1.bf16.msra.mxu0 0
  %576 = vmatprep.subr.bf16.mxu0 0
  %577 = vmatpush1.bf16.msra.mxu0 0
  %578 = vmatprep.subr.bf16.mxu0 0
  %579 = vmatpush1.bf16.msra.mxu0 0
  %580 = vmatprep.subr.bf16.mxu0 0
  %581 = vmatpush1.bf16.msra.mxu0 0
  %582 = vmatprep.subr.bf16.mxu0 0
  %583 = vmatpush1.bf16.msra.mxu0 0
  %584 = vmatprep.subr.bf16.mxu0 0
  %585 = vmatpush1.bf16.msra.mxu0 0
  %586 = vmatprep.subr.bf16.mxu0 0
  %587 = vmatpush1.bf16.msra.mxu0 0
  %588 = vmatprep.subr.bf16.mxu0 0
  %589 = vmatpush1.bf16.msra.mxu0 0
  %590 = vmatprep.subr.bf16.mxu0 0
  %591 = vmatpush1.bf16.msra.mxu0 0
  %592 = vmatprep.mubr.bf16.mxu0 0
  %593 = vmatmul.mubr.bf16.gmra.mrb[0].mxu0 %v558
  %v594 = vpop.f32.mrb[0].mxu0
  %v595 = vadd.f32 0.0, %v594
  %v596 = vpop.f32.mrb[0].mxu0
  %v597 = vpop.f32.mrb[0].mxu0
  %v598 = vadd.f32 0.0, %v597
  %v599 = vpop.f32.mrb[0].mxu0
  %600 = vdwg.mxu0
  %v601 = vpack.c.bf16 %v598, %v595
  %602 = vmatprep.subr.bf16.mxu0 0
  %603 = vmatpush1.bf16.msra.mxu0 %v601
  %604 = vmatprep.subr.bf16.mxu0 0
  %605 = vmatpush1.bf16.msra.mxu0 0
  %606 = vmatprep.subr.bf16.mxu0 0
  %607 = vmatpush1.bf16.msra.mxu0 0
  %608 = vmatprep.subr.bf16.mxu0 0
  %609 = vmatpush1.bf16.msra.mxu0 0
  %610 = vmatprep.subr.bf16.mxu0 0
  %611 = vmatpush1.bf16.msra.mxu0 0
  %612 = vmatprep.subr.bf16.mxu0 0
  %613 = vmatpush1.bf16.msra.mxu0 0
  %614 = vmatprep.subr.bf16.mxu0 0
  %615 = vmatpush1.bf16.msra.mxu0 0
  %616 = vmatprep.subr.bf16.mxu0 0
  %617 = vmatpush1.bf16.msra.mxu0 0
  %618 = vmatprep.subr.bf16.mxu0 0
  %619 = vmatpush1.bf16.msra.mxu0 0
  %620 = vmatprep.subr.bf16.mxu0 0
  %621 = vmatpush1.bf16.msra.mxu0 0
  %622 = vmatprep.subr.bf16.mxu0 0
  %623 = vmatpush1.bf16.msra.mxu0 0
  %624 = vmatprep.subr.bf16.mxu0 0
  %625 = vmatpush1.bf16.msra.mxu0 0
  %626 = vmatprep.subr.bf16.mxu0 0
  %627 = vmatpush1.bf16.msra.mxu0 0
  %628 = vmatprep.subr.bf16.mxu0 0
  %629 = vmatpush1.bf16.msra.mxu0 0
  %630 = vmatprep.subr.bf16.mxu0 0
  %631 = vmatpush1.bf16.msra.mxu0 0
  %632 = vmatprep.subr.bf16.mxu0 0
  %633 = vmatpush1.bf16.msra.mxu0 0
  %634 = vmatprep.mubr.bf16.mxu0 0
  %635 = vmatmul.mubr.bf16.gmra.mrb[0].mxu0 %v47
  %v636 = vpop.f32.mrb[0].mxu0
  %v637 = vadd.f32 %v165, %v636
  %v638 = vpop.f32.mrb[0].mxu0
  %v639 = vpop.f32.mrb[0].mxu0
  %v640 = vadd.f32 %v165, %v639
  %v641 = vpop.f32.mrb[0].mxu0
  %642 = vdwg.mxu0
  %v643 = vmul.f32 %v637, 0.01
  %v644 = vmul.f32 %v640, 0.01
  %v645 = vmax.f32 %v637, %v643
  %v646 = vmax.f32 %v640, %v644
  %v647 = vpack.c.bf16 %v646, %v645
  %v649 = vsel %vm192, %v647, 0
  %651 = vmatprep.subr.bf16.mxu0 0
  %652 = vmatpush1.bf16.msra.mxu0 %v184
  %653 = vmatprep.subr.bf16.mxu0 0
  %654 = vmatpush1.bf16.msra.mxu0 %v185
  %655 = vmatprep.subr.bf16.mxu0 0
  %656 = vmatpush1.bf16.msra.mxu0 %v186
  %657 = vmatprep.subr.bf16.mxu0 0
  %658 = vmatpush1.bf16.msra.mxu0 %v187
  %659 = vmatprep.subr.bf16.mxu0 0
  %660 = vmatpush1.bf16.msra.mxu0 0
  %661 = vmatprep.subr.bf16.mxu0 0
  %662 = vmatpush1.bf16.msra.mxu0 0
  %663 = vmatprep.subr.bf16.mxu0 0
  %664 = vmatpush1.bf16.msra.mxu0 0
  %665 = vmatprep.subr.bf16.mxu0 0
  %666 = vmatpush1.bf16.msra.mxu0 0
  %667 = vmatprep.subr.bf16.mxu0 0
  %668 = vmatpush1.bf16.msra.mxu0 0
  %669 = vmatprep.subr.bf16.mxu0 0
  %670 = vmatpush1.bf16.msra.mxu0 0
  %671 = vmatprep.subr.bf16.mxu0 0
  %672 = vmatpush1.bf16.msra.mxu0 0
  %673 = vmatprep.subr.bf16.mxu0 0
  %674 = vmatpush1.bf16.msra.mxu0 0
  %675 = vmatprep.subr.bf16.mxu0 0
  %676 = vmatpush1.bf16.msra.mxu0 0
  %677 = vmatprep.subr.bf16.mxu0 0
  %678 = vmatpush1.bf16.msra.mxu0 0
  %679 = vmatprep.subr.bf16.mxu0 0
  %680 = vmatpush1.bf16.msra.mxu0 0
  %681 = vmatprep.subr.bf16.mxu0 0
  %682 = vmatpush1.bf16.msra.mxu0 0
  %683 = vmatprep.mubr.bf16.mxu0 0
  %684 = vmatmul.mubr.bf16.gmra.mrb[0].mxu0 %v649
  %v685 = vpop.f32.mrb[0].mxu0
  %v686 = vadd.f32 0.0, %v685
  %v687 = vpop.f32.mrb[0].mxu0
  %v688 = vpop.f32.mrb[0].mxu0
  %v689 = vadd.f32 0.0, %v688
  %v690 = vpop.f32.mrb[0].mxu0
  %691 = vdwg.mxu0
  %v692 = vpack.c.bf16 %v689, %v686
  %693 = vmatprep.subr.bf16.mxu0 0
  %694 = vmatpush1.bf16.msra.mxu0 %v692
  %695 = vmatprep.subr.bf16.mxu0 0
  %696 = vmatpush1.bf16.msra.mxu0 0
  %697 = vmatprep.subr.bf16.mxu0 0
  %698 = vmatpush1.bf16.msra.mxu0 0
  %699 = vmatprep.subr.bf16.mxu0 0
  %700 = vmatpush1.bf16.msra.mxu0 0
  %701 = vmatprep.subr.bf16.mxu0 0
  %702 = vmatpush1.bf16.msra.mxu0 0
  %703 = vmatprep.subr.bf16.mxu0 0
  %704 = vmatpush1.bf16.msra.mxu0 0
  %705 = vmatprep.subr.bf16.mxu0 0
  %706 = vmatpush1.bf16.msra.mxu0 0
  %707 = vmatprep.subr.bf16.mxu0 0
  %708 = vmatpush1.bf16.msra.mxu0 0
  %709 = vmatprep.subr.bf16.mxu0 0
  %710 = vmatpush1.bf16.msra.mxu0 0
  %711 = vmatprep.subr.bf16.mxu0 0
  %712 = vmatpush1.bf16.msra.mxu0 0
  %713 = vmatprep.subr.bf16.mxu0 0
  %714 = vmatpush1.bf16.msra.mxu0 0
  %715 = vmatprep.subr.bf16.mxu0 0
  %716 = vmatpush1.bf16.msra.mxu0 0
  %717 = vmatprep.subr.bf16.mxu0 0
  %718 = vmatpush1.bf16.msra.mxu0 0
  %719 = vmatprep.subr.bf16.mxu0 0
  %720 = vmatpush1.bf16.msra.mxu0 0
  %721 = vmatprep.subr.bf16.mxu0 0
  %722 = vmatpush1.bf16.msra.mxu0 0
  %723 = vmatprep.subr.bf16.mxu0 0
  %724 = vmatpush1.bf16.msra.mxu0 0
  %725 = vmatprep.mubr.bf16.mxu0 0
  %726 = vmatmul.mubr.bf16.gmra.mrb[0].mxu0 %v47
  %v727 = vpop.f32.mrb[0].mxu0
  %v728 = vadd.f32 %v165, %v727
  %v729 = vpop.f32.mrb[0].mxu0
  %v730 = vpop.f32.mrb[0].mxu0
  %v731 = vadd.f32 %v165, %v730
  %v732 = vpop.f32.mrb[0].mxu0
  %733 = vdwg.mxu0
  %v734 = vmul.f32 %v728, 0.01
  %v735 = vmul.f32 %v731, 0.01
  %v736 = vmax.f32 %v728, %v734
  %v737 = vmax.f32 %v731, %v735
  %v738 = vpack.c.bf16 %v737, %v736
  %v740 = vsel %vm192, %v738, 0
  %742 = vmatprep.subr.bf16.mxu0 0
  %743 = vmatpush1.bf16.msra.mxu0 %v184
  %744 = vmatprep.subr.bf16.mxu0 0
  %745 = vmatpush1.bf16.msra.mxu0 %v185
  %746 = vmatprep.subr.bf16.mxu0 0
  %747 = vmatpush1.bf16.msra.mxu0 %v186
  %748 = vmatprep.subr.bf16.mxu0 0
  %749 = vmatpush1.bf16.msra.mxu0 %v187
  %750 = vmatprep.subr.bf16.mxu0 0
  %751 = vmatpush1.bf16.msra.mxu0 0
  %752 = vmatprep.subr.bf16.mxu0 0
  %753 = vmatpush1.bf16.msra.mxu0 0
  %754 = vmatprep.subr.bf16.mxu0 0
  %755 = vmatpush1.bf16.msra.mxu0 0
  %756 = vmatprep.subr.bf16.mxu0 0
  %757 = vmatpush1.bf16.msra.mxu0 0
  %758 = vmatprep.subr.bf16.mxu0 0
  %759 = vmatpush1.bf16.msra.mxu0 0
  %760 = vmatprep.subr.bf16.mxu0 0
  %761 = vmatpush1.bf16.msra.mxu0 0
  %762 = vmatprep.subr.bf16.mxu0 0
  %763 = vmatpush1.bf16.msra.mxu0 0
  %764 = vmatprep.subr.bf16.mxu0 0
  %765 = vmatpush1.bf16.msra.mxu0 0
  %766 = vmatprep.subr.bf16.mxu0 0
  %767 = vmatpush1.bf16.msra.mxu0 0
  %768 = vmatprep.subr.bf16.mxu0 0
  %769 = vmatpush1.bf16.msra.mxu0 0
  %770 = vmatprep.subr.bf16.mxu0 0
  %771 = vmatpush1.bf16.msra.mxu0 0
  %772 = vmatprep.subr.bf16.mxu0 0
  %773 = vmatpush1.bf16.msra.mxu0 0
  %774 = vmatprep.mubr.bf16.mxu0 0
  %775 = vmatmul.mubr.bf16.gmra.mrb[0].mxu0 %v740
  %v776 = vpop.f32.mrb[0].mxu0
  %v777 = vadd.f32 0.0, %v776
  %v778 = vpop.f32.mrb[0].mxu0
  %v779 = vpop.f32.mrb[0].mxu0
  %v780 = vadd.f32 0.0, %v779
  %v781 = vpop.f32.mrb[0].mxu0
  %782 = vdwg.mxu0
  %v783 = vpack.c.bf16 %v780, %v777
  %784 = vmatprep.subr.bf16.mxu0 0
  %785 = vmatpush1.bf16.msra.mxu0 %v783
  %786 = vmatprep.subr.bf16.mxu0 0
  %787 = vmatpush1.bf16.msra.mxu0 0
  %788 = vmatprep.subr.bf16.mxu0 0
  %789 = vmatpush1.bf16.msra.mxu0 0
  %790 = vmatprep.subr.bf16.mxu0 0
  %791 = vmatpush1.bf16.msra.mxu0 0
  %792 = vmatprep.subr.bf16.mxu0 0
  %793 = vmatpush1.bf16.msra.mxu0 0
  %794 = vmatprep.subr.bf16.mxu0 0
  %795 = vmatpush1.bf16.msra.mxu0 0
  %796 = vmatprep.subr.bf16.mxu0 0
  %797 = vmatpush1.bf16.msra.mxu0 0
  %798 = vmatprep.subr.bf16.mxu0 0
  %799 = vmatpush1.bf16.msra.mxu0 0
  %800 = vmatprep.subr.bf16.mxu0 0
  %801 = vmatpush1.bf16.msra.mxu0 0
  %802 = vmatprep.subr.bf16.mxu0 0
  %803 = vmatpush1.bf16.msra.mxu0 0
  %804 = vmatprep.subr.bf16.mxu0 0
  %805 = vmatpush1.bf16.msra.mxu0 0
  %806 = vmatprep.subr.bf16.mxu0 0
  %807 = vmatpush1.bf16.msra.mxu0 0
  %808 = vmatprep.subr.bf16.mxu0 0
  %809 = vmatpush1.bf16.msra.mxu0 0
  %810 = vmatprep.subr.bf16.mxu0 0
  %811 = vmatpush1.bf16.msra.mxu0 0
  %812 = vmatprep.subr.bf16.mxu0 0
  %813 = vmatpush1.bf16.msra.mxu0 0
  %814 = vmatprep.subr.bf16.mxu0 0
  %815 = vmatpush1.bf16.msra.mxu0 0
  %816 = vmatprep.mubr.bf16.mxu0 0
  %817 = vmatmul.mubr.bf16.gmra.mrb[0].mxu0 %v47
  %v818 = vpop.f32.mrb[0].mxu0
  %v819 = vadd.f32 %v165, %v818
  %v820 = vpop.f32.mrb[0].mxu0
  %v821 = vpop.f32.mrb[0].mxu0
  %v822 = vadd.f32 %v165, %v821
  %v823 = vpop.f32.mrb[0].mxu0
  %824 = vdwg.mxu0
  %v825 = vmul.f32 %v819, 0.01
  %v826 = vmul.f32 %v822, 0.01
  %v827 = vmax.f32 %v819, %v825
  %v828 = vmax.f32 %v822, %v826
  %v829 = vpack.c.bf16 %v828, %v827
  %v830 = vld [vmem:[%s6] sm:$0xf]
  %v831 = vld [vmem:[%s6 + $0x4] sm:$0xf]
  %v832 = vld [vmem:[%s6 + $0x8] sm:$0xf]
  %v833 = vld [vmem:[%s6 + $0xc] sm:$0xf]
  %v834 = vld [vmem:[%s6 + $0x10] sm:$0xf]
  %v835 = vld [vmem:[%s6 + $0x14] sm:$0xf]
  %v836 = vld [vmem:[%s6 + $0x18] sm:$0xf]
  %v837 = vld [vmem:[%s6 + $0x1c] sm:$0xf]
  %v846 = vunpack.c.l.b16 %v830
  %v847 = vunpack.c.l.b16 %v831
  %v848 = vunpack.c.l.b16 %v832
  %v849 = vunpack.c.l.b16 %v833
  %v850 = vunpack.c.l.b16 %v834
  %v851 = vunpack.c.l.b16 %v835
  %v852 = vunpack.c.l.b16 %v836
  %v853 = vunpack.c.l.b16 %v837
  %v854 = vpack.c.b16 %v847, %v846
  %v855 = vpack.c.b16 %v849, %v848
  %v856 = vpack.c.b16 %v851, %v850
  %v857 = vpack.c.b16 %v853, %v852
  %v863 = vsel %vm192, %v829, 0
  %865 = vmatprep.subr.bf16.mxu0 0
  %866 = vmatpush1.bf16.msra.mxu0 %v854
  %867 = vmatprep.subr.bf16.mxu0 0
  %868 = vmatpush1.bf16.msra.mxu0 %v855
  %869 = vmatprep.subr.bf16.mxu0 0
  %870 = vmatpush1.bf16.msra.mxu0 %v856
  %871 = vmatprep.subr.bf16.mxu0 0
  %872 = vmatpush1.bf16.msra.mxu0 %v857
  %873 = vmatprep.subr.bf16.mxu0 0
  %874 = vmatpush1.bf16.msra.mxu0 0
  %875 = vmatprep.subr.bf16.mxu0 0
  %876 = vmatpush1.bf16.msra.mxu0 0
  %877 = vmatprep.subr.bf16.mxu0 0
  %878 = vmatpush1.bf16.msra.mxu0 0
  %879 = vmatprep.subr.bf16.mxu0 0
  %880 = vmatpush1.bf16.msra.mxu0 0
  %881 = vmatprep.subr.bf16.mxu0 0
  %882 = vmatpush1.bf16.msra.mxu0 0
  %883 = vmatprep.subr.bf16.mxu0 0
  %884 = vmatpush1.bf16.msra.mxu0 0
  %885 = vmatprep.subr.bf16.mxu0 0
  %886 = vmatpush1.bf16.msra.mxu0 0
  %887 = vmatprep.subr.bf16.mxu0 0
  %888 = vmatpush1.bf16.msra.mxu0 0
  %889 = vmatprep.subr.bf16.mxu0 0
  %890 = vmatpush1.bf16.msra.mxu0 0
  %891 = vmatprep.subr.bf16.mxu0 0
  %892 = vmatpush1.bf16.msra.mxu0 0
  %893 = vmatprep.subr.bf16.mxu0 0
  %894 = vmatpush1.bf16.msra.mxu0 0
  %895 = vmatprep.subr.bf16.mxu0 0
  %896 = vmatpush1.bf16.msra.mxu0 0
  %897 = vmatprep.mubr.bf16.mxu0 0
  %898 = vmatmul.mubr.bf16.gmra.mrb[0].mxu0 %v863
  %v899 = vpop.f32.mrb[0].mxu0
  %v900 = vadd.f32 0.0, %v899
  %v901 = vpop.f32.mrb[0].mxu0
  %v902 = vpop.f32.mrb[0].mxu0
  %v903 = vadd.f32 0.0, %v902
  %v904 = vpop.f32.mrb[0].mxu0
  %905 = vdwg.mxu0
  %v906 = vpack.c.bf16 %v903, %v900
  %v907 = vld [vmem:[%s7] sm:$0x1]
  %v909 = vlaneseq
  %v910 = vshrl.u32 %v909, 7
  %v911 = vsub.s32 0, %v910
  %v912 = vrot.slane %v907, %v911
  %914 = vmatprep.subr.bf16.mxu0 0
  %915 = vmatpush1.bf16.msra.mxu0 %v906
  %916 = vmatprep.subr.bf16.mxu0 0
  %917 = vmatpush1.bf16.msra.mxu0 0
  %918 = vmatprep.subr.bf16.mxu0 0
  %919 = vmatpush1.bf16.msra.mxu0 0
  %920 = vmatprep.subr.bf16.mxu0 0
  %921 = vmatpush1.bf16.msra.mxu0 0
  %922 = vmatprep.subr.bf16.mxu0 0
  %923 = vmatpush1.bf16.msra.mxu0 0
  %924 = vmatprep.subr.bf16.mxu0 0
  %925 = vmatpush1.bf16.msra.mxu0 0
  %926 = vmatprep.subr.bf16.mxu0 0
  %927 = vmatpush1.bf16.msra.mxu0 0
  %928 = vmatprep.subr.bf16.mxu0 0
  %929 = vmatpush1.bf16.msra.mxu0 0
  %930 = vmatprep.subr.bf16.mxu0 0
  %931 = vmatpush1.bf16.msra.mxu0 0
  %932 = vmatprep.subr.bf16.mxu0 0
  %933 = vmatpush1.bf16.msra.mxu0 0
  %934 = vmatprep.subr.bf16.mxu0 0
  %935 = vmatpush1.bf16.msra.mxu0 0
  %936 = vmatprep.subr.bf16.mxu0 0
  %937 = vmatpush1.bf16.msra.mxu0 0
  %938 = vmatprep.subr.bf16.mxu0 0
  %939 = vmatpush1.bf16.msra.mxu0 0
  %940 = vmatprep.subr.bf16.mxu0 0
  %941 = vmatpush1.bf16.msra.mxu0 0
  %942 = vmatprep.subr.bf16.mxu0 0
  %943 = vmatpush1.bf16.msra.mxu0 0
  %944 = vmatprep.subr.bf16.mxu0 0
  %945 = vmatpush1.bf16.msra.mxu0 0
  %946 = vmatprep.mubr.bf16.mxu0 0
  %947 = vmatmul.mubr.bf16.gmra.mrb[0].mxu0 %v47
  %v948 = vpop.f32.mrb[0].mxu0
  %v949 = vadd.f32 %v912, %v948
  %v950 = vpop.f32.mrb[0].mxu0
  %v951 = vpop.f32.mrb[0].mxu0
  %v952 = vadd.f32 %v912, %v951
  %v953 = vpop.f32.mrb[0].mxu0
  %954 = vdwg.mxu0
  %vm955 = vcmask 23552
  %956 = vst.msk [vmem:[%s8] sm:$0xff] %vm955, %v949
  %957 = vst.msk [vmem:[%s8 + $0x8] sm:$0xff] %vm955, %v952
  // Predicated region
  $region34: #{tpu_custom_call.1} parent=0 // pred_check
    _
  $region35: #{tpu_custom_call.1} parent=0 // pred_check_branch
    %959 = sbr.rel (0) target = $region37
  $region36: #{tpu_custom_call.1} parent=0 // pred_region
    _
  $region37: #{tpu_custom_call.1} parent=0 // pred_fallthru
    _
  // Predicated region
  $region38: #{tpu_custom_call.1} parent=0 // pred_check
    _
  $region39: #{tpu_custom_call.1} parent=0 // pred_check_branch
    %961 = sbr.rel (0) target = $region41
  $region40: #{tpu_custom_call.1} parent=0 // pred_region
    _
  $region41: #{tpu_custom_call.1} parent=0 // pred_fallthru
    _

</llo_original>
